<compile_context>
chip_gen: v7x
topology: tpu7x:2x2x1
jax: 0.10.0
libtpu: 0.0.40
codegen_flags: <defaults>
</compile_context>

<pallas_src>
import jax
import jax.numpy as jnp
from jax.experimental import pallas as pl
from jax.experimental.pallas import tpu as pltpu


# --------------------------------------------------------------------------
# Fused Pallas kernel: normalize(folded) + 1x1 conv + ReLU + GAP + cls/box head
# One grid step per frame; pooled features never leave VMEM.
# --------------------------------------------------------------------------

def _fused_kernel(x_ref, w_bb_ref, b_bb_ref, q_ref, w_h_ref, b_h_ref, o_ref):
    """Per-frame fused forward.

    x_ref:    (C_in, H*W)  bf16 raw pixels for this frame, lane dim = H*W
    w_bb_ref: (D, C_in)    bf16 normalization-folded 1x1-conv weight
    b_bb_ref: (D, 1)       f32  normalization-folded conv bias
    q_ref:    (Q, D)       f32  query embeddings
    w_h_ref:  (D, P)       f32  fused [w_cls | w_box | zero-pad] head weight (P = 128)
    b_h_ref:  (1, P)       f32  fused head bias
    o_ref:    (Q, P)       f32  lane-dense raw head output block for this frame
    """
    hw = x_ref.shape[1]
    inv_hw = 1.0 / hw
    hi = jax.lax.Precision.HIGHEST

    # 1x1 conv over all pixels of the frame in one MXU matmul; bf16 x bf16 -> f32 acc.
    conv = jnp.dot(w_bb_ref[...], x_ref[...],
                   preferred_element_type=jnp.float32)                 # (D, H*W)
    conv = jnp.maximum(conv + b_bb_ref[...], 0.0)                      # bias + ReLU

    # Global average pool over pixels.
    # TODO(synk): at real image sizes this lane reduce moves to a tiled grid with a
    #             lane-wide (D, 128) partial-sum accumulator (see header TODO).
    pooled = jnp.sum(conv, axis=1, keepdims=True) * inv_hw             # (D, 1) f32

    # Decoder head via distributivity: (q + f) @ W = q @ W + f @ W.
    qw = jnp.dot(q_ref[...], w_h_ref[...],
                 preferred_element_type=jnp.float32, precision=hi)     # (Q, P)
    # f @ W with K = D only: broadcasted VPU multiply + sublane reduce (MXU would be
    # a near-empty systolic pass at this contraction width).
    fw = jnp.sum(pooled * w_h_ref[...], axis=0, keepdims=True)         # (1, P)

    o_ref[...] = qw + fw + b_h_ref[...]                                # lane-dense store


# --------------------------------------------------------------------------
# Weight preparation (exact folds, done in f32)
# --------------------------------------------------------------------------

def fold_normalization_into_conv(pixel_mean, pixel_std, w_bb, b_bb):
    """(x - mu)/sigma followed by a 1x1 conv == raw x through folded weights."""
    w_fold = (w_bb / pixel_std[:, None]).T                               # (D, C_in)
    b_fold = b_bb.reshape(-1) - (pixel_mean / pixel_std) @ w_bb          # (D,)
    return w_fold, b_fold.reshape(-1, 1)


def build_fused_head(w_cls, b_cls, w_box, b_box, lane_pad=128):
    """Concatenate cls/box heads and zero-pad the output dim to a lane-dense width."""
    w = jnp.concatenate([w_cls, w_box], axis=1)                          # (D, Ncls+4)
    b = jnp.concatenate([b_cls, b_box], axis=1)                          # (1, Ncls+4)
    width = w.shape[1]
    p = ((width + lane_pad - 1) // lane_pad) * lane_pad
    return jnp.pad(w, ((0, 0), (0, p - width))), jnp.pad(b, ((0, 0), (0, p - width)))


# --------------------------------------------------------------------------
# Single fused pallas_call wrapper
# --------------------------------------------------------------------------

def fused_forward(x, w_fold, b_fold, queries, w_head, b_head):
    """Raw frames (T, C_in, H, W) -> raw fused head outputs (T, Q, P)."""
    T, C_in, H, W = x.shape
    HW = H * W
    D, P = w_head.shape
    Q = queries.shape[0]

    # bf16 for the dominant image stream and the folded conv weight (folding done in f32
    # above); biases / queries / head weights stay f32 (tiny, keeps head math exact).
    x3d = x.reshape(T, C_in, HW).astype(jnp.bfloat16)
    w_fold_bf = w_fold.astype(jnp.bfloat16)

    flops = T * (2 * D * C_in * HW      # conv matmul
                 + 2 * D * HW           # bias + ReLU
                 + D * HW               # pooling adds
                 + 2 * Q * D * P        # queries @ w_head (per frame)
                 + 2 * D * P            # pooled feat @ w_head
                 + 2 * Q * P)           # broadcast adds
    bytes_accessed = (x3d.size * 2 + w_fold_bf.size * 2 + b_fold.size * 4
                      + queries.size * 4 + w_head.size * 4 + b_head.size * 4
                      + T * Q * P * 4)
    cost = pl.CostEstimate(flops=flops, transcendentals=0,
                           bytes_accessed=bytes_accessed)

    slab = pl.pallas_call(
        _fused_kernel,
        out_shape=jax.ShapeDtypeStruct((T, Q, P), jnp.float32),
        grid=(T,),
        in_specs=[
            pl.BlockSpec((None, C_in, HW), lambda t: (t, 0, 0)),   # one frame per step
            pl.BlockSpec((D, C_in), lambda t: (0, 0)),             # constant weights:
            pl.BlockSpec((D, 1), lambda t: (0, 0)),                # same block index ->
            pl.BlockSpec((Q, D), lambda t: (0, 0)),                # fetched once
            pl.BlockSpec((D, P), lambda t: (0, 0)),
            pl.BlockSpec((1, P), lambda t: (0, 0)),
        ],
        out_specs=pl.BlockSpec((None, Q, P), lambda t: (t, 0, 0)),
        compiler_params=pltpu.CompilerParams(
            dimension_semantics=("parallel",),      # frames are independent (megacore)
            vmem_limit_bytes=32 * 1024 * 1024,
        ),
        cost_estimate=cost,
    )(x3d, w_fold_bf, b_fold, queries, w_head, b_head)
    return slab


# --------------------------------------------------------------------------
# Inference glue (plain JAX)
# --------------------------------------------------------------------------

def inference(scores, pred_boxes, topk=100):
    """Mirrors SimpleBaseline.inference(): flatten (Q, Ncls), batched top-k, gather."""
    T, Q, C = scores.shape
    k = min(topk, Q * C)
    labels = jnp.tile(jnp.arange(C, dtype=jnp.int32)[None, :], (Q, 1)).reshape(-1)
    flat_scores = scores.reshape(T, Q * C)
    # TODO(synk): top-k stays in plain JAX (no clean Pallas sort/top-k primitive)
    top_scores, top_idx = jax.lax.top_k(flat_scores, k)                     # batched over T
    top_labels = labels[top_idx]                                            # (T, k)
    boxes_rep = jnp.broadcast_to(pred_boxes[:, :, None, :], (T, Q, C, 4)).reshape(T, Q * C, 4)
    top_boxes = jnp.take_along_axis(boxes_rep, top_idx[..., None], axis=1)  # (T, k, 4)
    return [
        {"scores": top_scores[t], "pred_classes": top_labels[t], "pred_boxes": top_boxes[t]}
        for t in range(T)
    ]


def simple_baseline_forward_inference(x, img_box, params, topk=100):
    """Full inference-window forward at small synthetic scale."""
    w_fold, b_fold = fold_normalization_into_conv(
        params["pixel_mean"], params["pixel_std"], params["w_bb"], params["b_bb"])
    w_head, b_head = build_fused_head(
        params["w_cls"], params["b_cls"], params["w_box"], params["b_box"])
    n_cls = params["w_cls"].shape[1]

    raw = fused_forward(x, w_fold, b_fold, params["queries"], w_head, b_head)  # (T, Q, P)

    pred_logits = raw[..., :n_cls]                                             # (T, Q, Ncls)
    scores = jax.nn.sigmoid(pred_logits)
    # init_boxes = img_box[:, None, :] -> per-frame scale [w, h, w, h]
    box_scale = jnp.stack(
        [img_box[:, 2], img_box[:, 3], img_box[:, 2], img_box[:, 3]], axis=-1)  # (T, 4)
    pred_boxes = jax.nn.sigmoid(raw[..., n_cls:n_cls + 4]) * box_scale[:, None, :]
    results = inference(scores, pred_boxes, topk=topk)
    return pred_logits, pred_boxes, results


# --------------------------------------------------------------------------
# Pure-JAX references (correctness verification only)
# --------------------------------------------------------------------------

def _reference_forward_f32(x, img_box, params):
    """Unfused full-f32 reference of the module semantics."""
    T, C_in, H, W = x.shape
    mu = params["pixel_mean"].reshape(1, C_in, 1, 1)
    sg = params["pixel_std"].reshape(1, C_in, 1, 1)
    xn = (x - mu) / sg
    x_cl = jnp.transpose(xn, (0, 2, 3, 1)).reshape(T, H * W, C_in)
    hi = jax.lax.Precision.HIGHEST
    pre = jnp.einsum("tpc,cd->tpd", x_cl, params["w_bb"], precision=hi) + params["b_bb"]
    feat = jnp.maximum(pre, 0.0).mean(axis=1)                               # (T, D)
    h = params["queries"][None, :, :] + feat[:, None, :]                    # (T, Q, D)
    logits = jnp.einsum("tqd,dc->tqc", h, params["w_cls"], precision=hi) + params["b_cls"]
    raw_box = jnp.einsum("tqd,dc->tqc", h, params["w_box"], precision=hi) + params["b_box"]
    scale = jnp.stack([img_box[:, 2], img_box[:, 3], img_box[:, 2], img_box[:, 3]], axis=-1)
    boxes = jax.nn.sigmoid(raw_box) * scale[:, None, :]
    return logits, boxes


def _reference_forward_bf16_matched(x, img_box, params):
    """Reference that mirrors the kernel's conscious bf16 casts (folding in f32 first)."""
    T, C_in, H, W = x.shape
    w_fold, b_fold = fold_normalization_into_conv(
        params["pixel_mean"], params["pixel_std"], params["w_bb"], params["b_bb"])
    w_head, b_head = build_fused_head(
        params["w_cls"], params["b_cls"], params["w_box"], params["b_box"])
    n_cls = params["w_cls"].shape[1]
    hi = jax.lax.Precision.HIGHEST
    xb = x.reshape(T, C_in, H * W).astype(jnp.bfloat16).astype(jnp.float32)
    wb = w_fold.astype(jnp.bfloat16).astype(jnp.float32)
    conv = jnp.einsum("dc,tcp->tdp", wb, xb, precision=hi) + b_fold[None]   # (T, D, HW)
    feat = jnp.maximum(conv, 0.0).mean(axis=2)                              # (T, D)
    h = params["queries"][None, :, :] + feat[:, None, :]                    # (T, Q, D)
    raw = jnp.einsum("tqd,dp->tqp", h, w_head, precision=hi) + b_head[None]
    logits = raw[..., :n_cls]
    scale = jnp.stack([img_box[:, 2], img_box[:, 3], img_box[:, 2], img_box[:, 3]], axis=-1)
    boxes = jax.nn.sigmoid(raw[..., n_cls:n_cls + 4]) * scale[:, None, :]
    return logits, boxes


# --------------------------------------------------------------------------
# Main
# --------------------------------------------------------------------------

if __name__ == "__main__":
    # Small synthetic configuration
    T = 2            # frames in the memory window (batch)
    H = W = 16       # image spatial size
    C_IN = 3         # RGB (cfg.MODEL.PIXEL_MEAN has 3 entries)
    HIDDEN = 32      # cfg.MODEL.SimpleBaseline.HIDDEN_DIM
    NUM_QUERIES = 8  # cfg.MODEL.SimpleBaseline.NUM_QUERIES
    NUM_CLASSES = 4

    key = jax.random.PRNGKey(0)
    k_img, k_q, k_bb, k_cls, k_box = jax.random.split(key, 5)

    # Input video frames, NCHW like PyTorch, integer pixel values [0, 255] (exact in bf16)
    x = jnp.floor(jax.random.uniform(k_img, (T, C_IN, H, W), jnp.float32, 0.0, 256.0))

    # img_box = [0, 0, w, h] per frame (from preprocess_image)
    img_box = jnp.tile(jnp.array([0.0, 0.0, float(W), float(H)], jnp.float32)[None, :], (T, 1))

    params = {
        "pixel_mean": jnp.array([103.530, 116.280, 123.675], jnp.float32),
        "pixel_std": jnp.array([57.375, 57.120, 58.395], jnp.float32),
        "queries": jax.random.normal(k_q, (NUM_QUERIES, HIDDEN), jnp.float32) * 0.02,
        "w_bb": jax.random.normal(k_bb, (C_IN, HIDDEN), jnp.float32) * 0.1,
        "b_bb": jnp.zeros((1, HIDDEN), jnp.float32),
        "w_cls": jax.random.normal(k_cls, (HIDDEN, NUM_CLASSES), jnp.float32) * 0.1,
        "b_cls": jnp.zeros((1, NUM_CLASSES), jnp.float32),
        "w_box": jax.random.normal(k_box, (HIDDEN, 4), jnp.float32) * 0.1,
        "b_box": jnp.zeros((1, 4), jnp.float32),
    }

    forward = jax.jit(simple_baseline_forward_inference)
    pred_logits, pred_boxes, results = forward(x, img_box, params)

    jax.block_until_ready(pred_logits)
    jax.block_until_ready(pred_boxes)
    for r in results:
        jax.block_until_ready(r["scores"])
        jax.block_until_ready(r["pred_classes"])
        jax.block_until_ready(r["pred_boxes"])

    # Shape checks
    assert pred_logits.shape == (T, NUM_QUERIES, NUM_CLASSES)
    assert pred_boxes.shape == (T, NUM_QUERIES, 4)
    assert len(results) == T
    k = min(100, NUM_QUERIES * NUM_CLASSES)
    assert results[0]["scores"].shape == (k,)
    assert results[0]["pred_classes"].shape == (k,)
    assert results[0]["pred_boxes"].shape == (k, 4)

    # Tight check: kernel vs a reference that uses the same (conscious) bf16 casts.
    mref_logits, mref_boxes = _reference_forward_bf16_matched(x, img_box, params)
    err_ml = float(jnp.max(jnp.abs(pred_logits - mref_logits)))
    err_mb = float(jnp.max(jnp.abs(pred_boxes - mref_boxes)))
    assert err_ml < 5e-3, f"pred_logits mismatch vs bf16-matched ref: {err_ml}"
    assert err_mb < 5e-3, f"pred_boxes mismatch vs bf16-matched ref: {err_mb}"

    # Documented, consciously-loosened check vs the full-f32 reference: the only delta is
    # bf16 rounding of the image stream / folded conv weight (pixels are exact in bf16).
    ref_logits, ref_boxes = _reference_forward_f32(x, img_box, params)
    err_logits = float(jnp.max(jnp.abs(pred_logits - ref_logits)))
    err_boxes = float(jnp.max(jnp.abs(pred_boxes - ref_boxes)))
    assert err_logits < 1e-1, f"pred_logits mismatch vs f32 ref: {err_logits}"
    assert err_boxes < 1e-1, f"pred_boxes mismatch vs f32 ref: {err_boxes}"

    print("KERNEL_OK")
</pallas_src>

<mosaic_0001>
module attributes {stable_mosaic.version = 11 : i64} {
  func.func @_fused_kernel(%arg0: i32, %arg1: memref<1x3x256xbf16, #tpu.memory_space<vmem>>, %arg2: memref<32x3xbf16, #tpu.memory_space<vmem>>, %arg3: memref<32x1xf32, #tpu.memory_space<vmem>>, %arg4: memref<8x32xf32, #tpu.memory_space<vmem>>, %arg5: memref<32x128xf32, #tpu.memory_space<vmem>>, %arg6: memref<1x128xf32, #tpu.memory_space<vmem>>, %arg7: memref<1x8x128xf32, #tpu.memory_space<vmem>>) attributes {dimension_semantics = [#tpu.dimension_semantics<parallel>], iteration_bounds = array<i64: 2>, scalar_prefetch = 0 : i64, scratch_operands = 0 : i64, tpu.core_type = #tpu.core_type<tc>, window_params = [{transform_indices = @transform_0, window_bounds = array<i64: 1, 3, 256>}, {pipeline_mode = #tpu.pipeline_mode<synchronous>, transform_indices = @transform_1, window_bounds = array<i64: 32, 3>}, {pipeline_mode = #tpu.pipeline_mode<synchronous>, transform_indices = @transform_2, window_bounds = array<i64: 32, 1>}, {pipeline_mode = #tpu.pipeline_mode<synchronous>, transform_indices = @transform_3, window_bounds = array<i64: 8, 32>}, {pipeline_mode = #tpu.pipeline_mode<synchronous>, transform_indices = @transform_4, window_bounds = array<i64: 32, 128>}, {pipeline_mode = #tpu.pipeline_mode<synchronous>, transform_indices = @transform_5, window_bounds = array<i64: 1, 128>}, {transform_indices = @transform_6, window_bounds = array<i64: 1, 8, 128>}]} {
    %c0 = arith.constant 0 : index
    %c0_0 = arith.constant 0 : index
    %0 = vector.load %arg2[%c0, %c0_0] : memref<32x3xbf16, #tpu.memory_space<vmem>>, vector<32x3xbf16>
    %c0_1 = arith.constant 0 : index
    %c0_2 = arith.constant 0 : index
    %c0_3 = arith.constant 0 : index
    %1 = vector.load %arg1[%c0_1, %c0_2, %c0_3] : memref<1x3x256xbf16, #tpu.memory_space<vmem>>, vector<1x3x256xbf16>
    %2 = vector.shape_cast %1 : vector<1x3x256xbf16> to vector<3x256xbf16>
    %cst = arith.constant dense<0.000000e+00> : vector<32x256xf32>
    %3 = tpu.matmul %0, %2, %cst {dimension_numbers = #tpu.dot_dimension_numbers<[1], [0], [0], [1], [0, 0, 1, 1], [], []>} : vector<32x3xbf16>, vector<3x256xbf16>, vector<32x256xf32> -> vector<32x256xf32>
    %c0_4 = arith.constant 0 : index
    %c0_5 = arith.constant 0 : index
    %4 = vector.load %arg3[%c0_4, %c0_5] : memref<32x1xf32, #tpu.memory_space<vmem>>, vector<32x1xf32>
    %5 = vector.broadcast %4 : vector<32x1xf32> to vector<32x256xf32>
    %6 = arith.addf %3, %5 : vector<32x256xf32>
    %cst_6 = arith.constant 0.000000e+00 : f32
    %7 = vector.broadcast %cst_6 : f32 to vector<32x256xf32>
    %8 = arith.maximumf %6, %7 : vector<32x256xf32>
    %cst_7 = arith.constant dense<0.000000e+00> : vector<32xf32>
    %9 = vector.multi_reduction <add>, %8, %cst_7 [1] : vector<32x256xf32> to vector<32xf32>
    %10 = vector.shape_cast %9 : vector<32xf32> to vector<32x1xf32>
    %cst_8 = arith.constant 3.906250e-03 : f32
    %11 = vector.broadcast %cst_8 : f32 to vector<32x1xf32>
    %12 = arith.mulf %10, %11 : vector<32x1xf32>
    %c0_9 = arith.constant 0 : index
    %c0_10 = arith.constant 0 : index
    %13 = vector.load %arg4[%c0_9, %c0_10] : memref<8x32xf32, #tpu.memory_space<vmem>>, vector<8x32xf32>
    %c0_11 = arith.constant 0 : index
    %c0_12 = arith.constant 0 : index
    %14 = vector.load %arg5[%c0_11, %c0_12] : memref<32x128xf32, #tpu.memory_space<vmem>>, vector<32x128xf32>
    %cst_13 = arith.constant dense<0.000000e+00> : vector<8x128xf32>
    %15 = tpu.matmul %13, %14, %cst_13 {dimension_numbers = #tpu.dot_dimension_numbers<[1], [0], [0], [1], [0, 0, 1, 1], [], []>, precision = #tpu.contract_precision<fp32>} : vector<8x32xf32>, vector<32x128xf32>, vector<8x128xf32> -> vector<8x128xf32>
    %c0_14 = arith.constant 0 : index
    %c0_15 = arith.constant 0 : index
    %16 = vector.load %arg5[%c0_14, %c0_15] : memref<32x128xf32, #tpu.memory_space<vmem>>, vector<32x128xf32>
    %17 = vector.broadcast %12 : vector<32x1xf32> to vector<32x128xf32>
    %18 = arith.mulf %17, %16 : vector<32x128xf32>
    %cst_16 = arith.constant dense<0.000000e+00> : vector<128xf32>
    %19 = vector.multi_reduction <add>, %18, %cst_16 [0] : vector<32x128xf32> to vector<128xf32>
    %20 = vector.shape_cast %19 : vector<128xf32> to vector<1x128xf32>
    %21 = vector.broadcast %20 : vector<1x128xf32> to vector<8x128xf32>
    %22 = arith.addf %15, %21 : vector<8x128xf32>
    %c0_17 = arith.constant 0 : index
    %c0_18 = arith.constant 0 : index
    %23 = vector.load %arg6[%c0_17, %c0_18] : memref<1x128xf32, #tpu.memory_space<vmem>>, vector<1x128xf32>
    %24 = vector.broadcast %23 : vector<1x128xf32> to vector<8x128xf32>
    %25 = arith.addf %22, %24 : vector<8x128xf32>
    %c0_19 = arith.constant 0 : index
    %c0_20 = arith.constant 0 : index
    %c0_21 = arith.constant 0 : index
    %26 = vector.load %arg7[%c0_19, %c0_20, %c0_21] : memref<1x8x128xf32, #tpu.memory_space<vmem>>, vector<1x8x128xf32>
    %27 = vector.shape_cast %26 : vector<1x8x128xf32> to vector<8x128xf32>
    %28 = vector.shape_cast %25 : vector<8x128xf32> to vector<1x8x128xf32>
    tpu.vector_store %arg7[%c0_19, %c0_20, %c0_21], %28 {strides = array<i32>} : memref<1x8x128xf32, #tpu.memory_space<vmem>>, vector<1x8x128xf32>,
    return
  }
  func.func @transform_0(%arg0: i32) -> (i32, i32, i32) {
    %c0_i32 = arith.constant 0 : i32
    %c0_i32_0 = arith.constant 0 : i32
    %c0_i32_1 = arith.constant 0 : i32
    return %arg0, %c0_i32, %c0_i32_0 : i32, i32, i32
  }
  func.func @transform_1(%arg0: i32) -> (i32, i32) {
    %c0_i32 = arith.constant 0 : i32
    %c0_i32_0 = arith.constant 0 : i32
    %c0_i32_1 = arith.constant 0 : i32
    return %c0_i32, %c0_i32_0 : i32, i32
  }
  func.func @transform_2(%arg0: i32) -> (i32, i32) {
    %c0_i32 = arith.constant 0 : i32
    %c0_i32_0 = arith.constant 0 : i32
    %c0_i32_1 = arith.constant 0 : i32
    return %c0_i32, %c0_i32_0 : i32, i32
  }
  func.func @transform_3(%arg0: i32) -> (i32, i32) {
    %c0_i32 = arith.constant 0 : i32
    %c0_i32_0 = arith.constant 0 : i32
    %c0_i32_1 = arith.constant 0 : i32
    return %c0_i32, %c0_i32_0 : i32, i32
  }
  func.func @transform_4(%arg0: i32) -> (i32, i32) {
    %c0_i32 = arith.constant 0 : i32
    %c0_i32_0 = arith.constant 0 : i32
    %c0_i32_1 = arith.constant 0 : i32
    return %c0_i32, %c0_i32_0 : i32, i32
  }
  func.func @transform_5(%arg0: i32) -> (i32, i32) {
    %c0_i32 = arith.constant 0 : i32
    %c0_i32_0 = arith.constant 0 : i32
    %c0_i32_1 = arith.constant 0 : i32
    return %c0_i32, %c0_i32_0 : i32, i32
  }
  func.func @transform_6(%arg0: i32) -> (i32, i32, i32) {
    %c0_i32 = arith.constant 0 : i32
    %c0_i32_0 = arith.constant 0 : i32
    %c0_i32_1 = arith.constant 0 : i32
    return %arg0, %c0_i32, %c0_i32_0 : i32, i32, i32
  }
}

</mosaic_0001>

<llo_original>
// kernel: div.11
$region0: #{div.11}
  #allocation0 [shape = 's32[1]{0}', space=sflag, size = 0x4, scoped, tag = 'scoped memory for div.11']
  %s0 = inlined_call_operand.vmem [shape: f32[3], index: 0, kind: input, shape index: {}]
  %s1 = inlined_call_operand.vmem [shape: f32[3], index: 1, kind: input, shape index: {}]
  %s2 = inlined_call_operand.vmem [shape: f32[3], index: 2, kind: output, shape index: {}]
  %v3 = vld [vmem:[%s0] sm:$0x1]
  %v4 = vld [vmem:[%s1] sm:$0x1]
  %5 = xla_tuple %v3, %v4
  %6 = xla_tuple %5
  %v7 = vrcp.pop %v4
  %v8 = vmul.f32 %v3, %v7
  %9 = xla_tuple %v8
  %10 = vst [vmem:[%s2] sm:$0x1] %v8

// kernel: tile.7
$region0: #{tile.7}
  %s0 = inlined_call_operand.vmem [shape: s32[8,1,1,4], index: 0, kind: input, shape index: {}]
  %s1 = inlined_call_operand.vmem [shape: s32[32], index: 1, kind: output, shape index: {}]
  $region1: #{tile.7} parent=0
    #allocation0 [shape = 'u8[4096]{0}', space=vmem, size = 0x1000, scoped, tag = 'scoped mem for output reshape']
    %v2 = vld [vmem:[%s0] sm:$0x1]
    %vm3 = vcmask 31744
    %4 = vst.msk [vmem:[#allocation0] sm:$0x1] %vm3, %v2
    %s5 = scalar_lea.vmem %s0, 7
    %v6 = vld [vmem:[%s5] sm:$0x1]
    %7 = vrot.lane.b32.xlu0 %v6, 28
    %v8 = vpop.permute.xlu0 %7
    %vm9 = vcmask 261344
    %10 = vst.msk [vmem:[#allocation0] sm:$0x1] %vm9, %v8
    %s11 = scalar_lea.vmem %s0, 6
    %v12 = vld [vmem:[%s11] sm:$0x1]
    %13 = vrot.lane.b32.xlu0 %v12, 24
    %v14 = vpop.permute.xlu0 %13
    %vm15 = vcmask 228544
    %16 = vst.msk [vmem:[#allocation0] sm:$0x1] %vm15, %v14
    %s17 = scalar_lea.vmem %s0, 5
    %v18 = vld [vmem:[%s17] sm:$0x1]
    %19 = vrot.lane.b32.xlu0 %v18, 20
    %v20 = vpop.permute.xlu0 %19
    %vm21 = vcmask 195744
    %22 = vst.msk [vmem:[#allocation0] sm:$0x1] %vm21, %v20
    %s23 = scalar_lea.vmem %s0, 4
    %v24 = vld [vmem:[%s23] sm:$0x1]
    %25 = vrot.lane.b32.xlu0 %v24, 16
    %v26 = vpop.permute.xlu0 %25
    %vm27 = vcmask 162944
    %28 = vst.msk [vmem:[#allocation0] sm:$0x1] %vm27, %v26
    %s29 = scalar_lea.vmem %s0, 3
    %v30 = vld [vmem:[%s29] sm:$0x1]
    %31 = vrot.lane.b32.xlu0 %v30, 12
    %v32 = vpop.permute.xlu0 %31
    %vm33 = vcmask 130144
    %34 = vst.msk [vmem:[#allocation0] sm:$0x1] %vm33, %v32
    %s35 = scalar_lea.vmem %s0, 2
    %v36 = vld [vmem:[%s35] sm:$0x1]
    %37 = vrot.lane.b32.xlu0 %v36, 8
    %v38 = vpop.permute.xlu0 %37
    %vm39 = vcmask 97344
    %40 = vst.msk [vmem:[#allocation0] sm:$0x1] %vm39, %v38
    %s41 = scalar_lea.vmem %s0, 1
    %v42 = vld [vmem:[%s41] sm:$0x1]
    %43 = vrot.lane.b32.xlu0 %v42, 4
    %v44 = vpop.permute.xlu0 %43
    %vm45 = vcmask 64544
    %46 = vst.msk [vmem:[#allocation0] sm:$0x1] %vm45, %v44
    %s48 = sshllo.u32 0, 1
    %v50 = vld [vmem:[#allocation0] sm:%s48]
    %s51 = sshllo.u32 0, 1
    %52 = vst [vmem:[%s1] sm:%s51] %v50

// kernel: simple_baseline_forward_inference.1
$region0: #{simple_baseline_forward_inference.1}
  #allocation0 [shape = 'u32[]', space=smem, size = 0x4, offset = 0x4, fixed_abs, tag = 'smem constant byte address 0x4 - core index']
  #allocation1 [shape = 'u32[144,128]{1,0:T(1,128)}', space=vmem, size = 0x12000, scoped, tag = 'internal scratch']
  %s0 = inlined_call_operand.vmem [shape: bf16[2,3,256], index: 0, kind: input, shape index: {}]
  %s1 = inlined_call_operand.vmem [shape: bf16[32,3], index: 1, kind: input, shape index: {}]
  %s2 = inlined_call_operand.vmem [shape: f32[32,1], index: 2, kind: input, shape index: {}]
  %s3 = inlined_call_operand.vmem [shape: f32[8,32], index: 3, kind: input, shape index: {}]
  %s4 = inlined_call_operand.vmem [shape: f32[32,128], index: 4, kind: input, shape index: {}]
  %s5 = inlined_call_operand.vmem [shape: f32[1,128], index: 5, kind: input, shape index: {}]
  %s6 = inlined_call_operand.vmem [shape: f32[2,8,128], index: 6, kind: output, shape index: {}]
  %s7 = sld [smem:[#allocation0]]
  $region57: #{simple_baseline_forward_inference.1} parent=0
    _
  %s9 = ssub.s32 1, %s7
  %s10 = scalar_select 0, %s9, %s7
  loop: start=0, step=1, limit=4
  $region2: #{simple_baseline_forward_inference.1} parent=0 // loop_pre_header
    _
  $region3: #{simple_baseline_forward_inference.1} parent=0 // loop_header
    %s12 = sphi 0, %s16
    %p13 = scmp.ge.s32.totalorder %s12, 4
    %s22 = sphi 0, %s24
    %s25 = sphi 0, %s22
    %s26 = sphi 0, %s25
    %s42 = sphi 0, %s26
    %s46 = sphi 0, %s46
    %s48 = sphi 0, %s46
    %s49 = sphi 0, %s48
    %s63 = sphi 0, %s49
    %s67 = sphi 0, %s67
    %s69 = sphi 0, %s67
    %s70 = sphi 0, %s69
    %s84 = sphi 0, %s70
    %s88 = sphi 0, %s88
    %s90 = sphi 0, %s88
    %s91 = sphi 0, %s90
    %s105 = sphi 0, %s91
    %s109 = sphi 0, %s109
    %s111 = sphi 0, %s109
    %s112 = sphi 0, %s111
    %s126 = sphi 0, %s112
    %s130 = sphi 0, %s130
    %s132 = sphi 0, %s130
    %s133 = sphi 0, %s132
    %s147 = sphi 0, %s133
    %s153 = sphi 0, %s155
    %s156 = sphi 0, %s153
    %s157 = sphi 0, %s156
    %s173 = sphi 0, %s157
  $region4: #{simple_baseline_forward_inference.1} parent=0 // loop_header_branch
    %15 = sbr.rel (%p13) target = $region8
  $region5: #{simple_baseline_forward_inference.1} parent=0 // loop_body
    %s17 = ssub.s32 %s12, 1
    %s18 = ssub.s32 %s12, 2
    %s19 = sadd.s32 %s12, 1
    %s20 = ssub.s32 %s12, %s19
    %p21 = scmp.eq.s32.totalorder %s20, 0
    %s23 = sadd.s32 %s22, 1
    %s24 = scalar_select %p21, %s22, %s23
    %p27 = pneg %p21
    %p28 = scmp.eq.s32.totalorder %s12, 1
    %p29 = por %p27, %p28
    %p30 = scmp.ne.s32.totalorder %s22, %s25
    %p31 = scmp.eq.s32.totalorder %s12, 0
    %p32 = por %p30, %p31
    %p33 = scmp.ne.s32.totalorder %s22, %s25
    %p34 = scmp.eq.s32.totalorder %s17, 1
    %p35 = por %p33, %p34
    %p36 = scmp.ne.s32.totalorder %s25, %s26
    %p37 = scmp.eq.s32.totalorder %s17, 0
    %p38 = por %p36, %p37
    %p39 = scmp.ne.s32.totalorder %s25, %s26
    %p40 = scmp.eq.s32.totalorder %s18, 1
    %p41 = por %p39, %p40
    %p43 = scmp.ne.s32.totalorder %s26, %s42
    %p44 = scmp.eq.s32.totalorder %s18, 0
    %p45 = por %p43, %p44
    %s47 = sadd.s32 %s46, 1
    %p50 = scmp.eq.s32.totalorder %s12, 1
    %p51 = scmp.ne.s32.totalorder %s46, %s48
    %p52 = scmp.eq.s32.totalorder %s12, 0
    %p53 = por %p51, %p52
    %p54 = scmp.ne.s32.totalorder %s46, %s48
    %p55 = scmp.eq.s32.totalorder %s17, 1
    %p56 = por %p54, %p55
    %p57 = scmp.ne.s32.totalorder %s48, %s49
    %p58 = scmp.eq.s32.totalorder %s17, 0
    %p59 = por %p57, %p58
    %p60 = scmp.ne.s32.totalorder %s48, %s49
    %p61 = scmp.eq.s32.totalorder %s18, 1
    %p62 = por %p60, %p61
    %p64 = scmp.ne.s32.totalorder %s49, %s63
    %p65 = scmp.eq.s32.totalorder %s18, 0
    %p66 = por %p64, %p65
    %s68 = sadd.s32 %s67, 1
    %p71 = scmp.eq.s32.totalorder %s12, 1
    %p72 = scmp.ne.s32.totalorder %s67, %s69
    %p73 = scmp.eq.s32.totalorder %s12, 0
    %p74 = por %p72, %p73
    %p75 = scmp.ne.s32.totalorder %s67, %s69
    %p76 = scmp.eq.s32.totalorder %s17, 1
    %p77 = por %p75, %p76
    %p78 = scmp.ne.s32.totalorder %s69, %s70
    %p79 = scmp.eq.s32.totalorder %s17, 0
    %p80 = por %p78, %p79
    %p81 = scmp.ne.s32.totalorder %s69, %s70
    %p82 = scmp.eq.s32.totalorder %s18, 1
    %p83 = por %p81, %p82
    %p85 = scmp.ne.s32.totalorder %s70, %s84
    %p86 = scmp.eq.s32.totalorder %s18, 0
    %p87 = por %p85, %p86
    %s89 = sadd.s32 %s88, 1
    %p92 = scmp.eq.s32.totalorder %s12, 1
    %p93 = scmp.ne.s32.totalorder %s88, %s90
    %p94 = scmp.eq.s32.totalorder %s12, 0
    %p95 = por %p93, %p94
    %p96 = scmp.ne.s32.totalorder %s88, %s90
    %p97 = scmp.eq.s32.totalorder %s17, 1
    %p98 = por %p96, %p97
    %p99 = scmp.ne.s32.totalorder %s90, %s91
    %p100 = scmp.eq.s32.totalorder %s17, 0
    %p101 = por %p99, %p100
    %p102 = scmp.ne.s32.totalorder %s90, %s91
    %p103 = scmp.eq.s32.totalorder %s18, 1
    %p104 = por %p102, %p103
    %p106 = scmp.ne.s32.totalorder %s91, %s105
    %p107 = scmp.eq.s32.totalorder %s18, 0
    %p108 = por %p106, %p107
    %s110 = sadd.s32 %s109, 1
    %p113 = scmp.eq.s32.totalorder %s12, 1
    %p114 = scmp.ne.s32.totalorder %s109, %s111
    %p115 = scmp.eq.s32.totalorder %s12, 0
    %p116 = por %p114, %p115
    %p117 = scmp.ne.s32.totalorder %s109, %s111
    %p118 = scmp.eq.s32.totalorder %s17, 1
    %p119 = por %p117, %p118
    %p120 = scmp.ne.s32.totalorder %s111, %s112
    %p121 = scmp.eq.s32.totalorder %s17, 0
    %p122 = por %p120, %p121
    %p123 = scmp.ne.s32.totalorder %s111, %s112
    %p124 = scmp.eq.s32.totalorder %s18, 1
    %p125 = por %p123, %p124
    %p127 = scmp.ne.s32.totalorder %s112, %s126
    %p128 = scmp.eq.s32.totalorder %s18, 0
    %p129 = por %p127, %p128
    %s131 = sadd.s32 %s130, 1
    %p134 = scmp.eq.s32.totalorder %s12, 1
    %p135 = scmp.ne.s32.totalorder %s130, %s132
    %p136 = scmp.eq.s32.totalorder %s12, 0
    %p137 = por %p135, %p136
    %p138 = scmp.ne.s32.totalorder %s130, %s132
    %p139 = scmp.eq.s32.totalorder %s17, 1
    %p140 = por %p138, %p139
    %p141 = scmp.ne.s32.totalorder %s132, %s133
    %p142 = scmp.eq.s32.totalorder %s17, 0
    %p143 = por %p141, %p142
    %p144 = scmp.ne.s32.totalorder %s132, %s133
    %p145 = scmp.eq.s32.totalorder %s18, 1
    %p146 = por %p144, %p145
    %p148 = scmp.ne.s32.totalorder %s133, %s147
    %p149 = scmp.eq.s32.totalorder %s18, 0
    %p150 = por %p148, %p149
    %s151 = ssub.s32 %s12, %s19
    %p152 = scmp.eq.s32.totalorder %s151, 0
    %s154 = sadd.s32 %s153, 1
    %s155 = scalar_select %p152, %s153, %s154
    %p158 = pneg %p152
    %p159 = scmp.eq.s32.totalorder %s12, 1
    %p160 = por %p158, %p159
    %p161 = scmp.ne.s32.totalorder %s153, %s156
    %p162 = scmp.eq.s32.totalorder %s12, 0
    %p163 = por %p161, %p162
    %p164 = scmp.ne.s32.totalorder %s153, %s156
    %p165 = scmp.eq.s32.totalorder %s17, 1
    %p166 = por %p164, %p165
    %p167 = scmp.ne.s32.totalorder %s156, %s157
    %p168 = scmp.eq.s32.totalorder %s17, 0
    %p169 = por %p167, %p168
    %p170 = scmp.ne.s32.totalorder %s156, %s157
    %p171 = scmp.eq.s32.totalorder %s18, 1
    %p172 = por %p170, %p171
    %p174 = scmp.ne.s32.totalorder %s157, %s173
    %p175 = scmp.eq.s32.totalorder %s18, 0
    %p176 = por %p174, %p175
    %p177 = scmp.le.s32.totalorder 1, %s12
    %p178 = scmp.lt.s32.totalorder %s12, 3
    %p179 = pnand %p177, %p178
    %p180 = pneg %p179
    // Predicated region
    $region9: #{simple_baseline_forward_inference.1} parent=5 // pred_check
      _
    $region10: #{simple_baseline_forward_inference.1} parent=5 // pred_check_branch
      %182 = sbr.rel (%p179) target = $region12
    $region11: #{simple_baseline_forward_inference.1} parent=5 // pred_region
      %s183 = ssub.s32 %s12, 1
      // Predicated region
      $region13: #{simple_baseline_forward_inference.1} parent=11 // pred_check
        %p184 = pneg %p59
      $region14: #{simple_baseline_forward_inference.1} parent=11 // pred_check_branch
        %186 = sbr.rel (%p184) target = $region16
      $region15: #{simple_baseline_forward_inference.1} parent=11 // pred_region
        _
      $region16: #{simple_baseline_forward_inference.1} parent=11 // pred_fallthru
        _
      // Predicated region
      $region17: #{simple_baseline_forward_inference.1} parent=11 // pred_check
        %p187 = pneg %p80
      $region18: #{simple_baseline_forward_inference.1} parent=11 // pred_check_branch
        %189 = sbr.rel (%p187) target = $region20
      $region19: #{simple_baseline_forward_inference.1} parent=11 // pred_region
        _
      $region20: #{simple_baseline_forward_inference.1} parent=11 // pred_fallthru
        _
      // Predicated region
      $region21: #{simple_baseline_forward_inference.1} parent=11 // pred_check
        %p190 = pneg %p101
      $region22: #{simple_baseline_forward_inference.1} parent=11 // pred_check_branch
        %192 = sbr.rel (%p190) target = $region24
      $region23: #{simple_baseline_forward_inference.1} parent=11 // pred_region
        _
      $region24: #{simple_baseline_forward_inference.1} parent=11 // pred_fallthru
        _
      // Predicated region
      $region25: #{simple_baseline_forward_inference.1} parent=11 // pred_check
        %p193 = pneg %p122
      $region26: #{simple_baseline_forward_inference.1} parent=11 // pred_check_branch
        %195 = sbr.rel (%p193) target = $region28
      $region27: #{simple_baseline_forward_inference.1} parent=11 // pred_region
        _
      $region28: #{simple_baseline_forward_inference.1} parent=11 // pred_fallthru
        _
      // Predicated region
      $region29: #{simple_baseline_forward_inference.1} parent=11 // pred_check
        %p196 = pneg %p143
      $region30: #{simple_baseline_forward_inference.1} parent=11 // pred_check_branch
        %198 = sbr.rel (%p196) target = $region32
      $region31: #{simple_baseline_forward_inference.1} parent=11 // pred_region
        _
      $region32: #{simple_baseline_forward_inference.1} parent=11 // pred_fallthru
        _
    $region12: #{simple_baseline_forward_inference.1} parent=5 // pred_fallthru
      _
    %p199 = scmp.lt.s32.totalorder %s12, 2
    // Predicated region
    $region33: #{simple_baseline_forward_inference.1} parent=5 // pred_check
      %p200 = pneg %p199
    $region34: #{simple_baseline_forward_inference.1} parent=5 // pred_check_branch
      %202 = sbr.rel (%p200) target = $region36
    $region35: #{simple_baseline_forward_inference.1} parent=5 // pred_region
      // Predicated region
      $region37: #{simple_baseline_forward_inference.1} parent=35 // pred_check
        %p203 = pneg %p32
      $region38: #{simple_baseline_forward_inference.1} parent=35 // pred_check_branch
        %205 = sbr.rel (%p203) target = $region40
      $region39: #{simple_baseline_forward_inference.1} parent=35 // pred_region
        %p206 = scmp.lt.s32.totalorder %s12, 1
        %s207 = scalar_select %p206, %s12, 1
        %s208 = smul.addr %s207, 2
        %s209 = smul.addr %s208, 2
        %s210 = scalar_lea.vmem %s0, %s209
      $region40: #{simple_baseline_forward_inference.1} parent=35 // pred_fallthru
        _
    $region36: #{simple_baseline_forward_inference.1} parent=5 // pred_fallthru
      _
    %p211 = scmp.le.s32.totalorder 1, %s12
    %p212 = scmp.lt.s32.totalorder %s12, 3
    %p213 = pnand %p211, %p212
    %p214 = pneg %p213
    // Predicated region
    $region41: #{simple_baseline_forward_inference.1} parent=5 // pred_check
      _
    $region42: #{simple_baseline_forward_inference.1} parent=5 // pred_check_branch
      %216 = sbr.rel (%p213) target = $region44
    $region43: #{simple_baseline_forward_inference.1} parent=5 // pred_region
      %s217 = ssub.s32 %s12, 1
      %p218 = scmp.lt.s32.totalorder %s17, 1
      %s219 = scalar_select %p218, %s17, 1
      %s220 = smul.addr %s219, 2
      %s221 = smul.addr %s220, 2
      %s222 = scalar_lea.vmem %s0, %s221
      %p223 = pneg %p38
      %p224 = pneg %p35
      %p225 = pneg %p59
      %p226 = pneg %p56
      %p227 = pneg %p80
      %p228 = pneg %p77
      %p229 = pneg %p101
      %p230 = pneg %p98
      %p231 = pneg %p122
      %p232 = pneg %p119
      %p233 = pneg %p143
      %p234 = pneg %p140
      %p235 = pneg %p169
      %p236 = pneg %p166
      %p237 = scmp.lt.s32.totalorder %s17, 1
      %s238 = scalar_select %p237, %s17, 1
      %s239 = smul.addr %s238, 8
      %s240 = scalar_lea.vmem %s6, %s239
      %p241 = scmp.lt.s32.totalorder %s17, 1
      %s242 = scalar_select %p241, %s17, 1
      %s243 = smul.addr %s242, 2
      %s244 = smul.addr %s243, 2
      %s245 = scalar_lea.vmem %s0, %s244
      %p246 = scmp.lt.s32.totalorder %s17, 1
      %s247 = scalar_select %p246, %s17, 1
      %s248 = smul.addr %s247, 8
      %s249 = scalar_lea.vmem %s6, %s248
      %v251 = vld [vmem:[%s1] sm:$0xf]
      %v252 = vld [vmem:[%s1 + $0x4] sm:$0xf]
      %v253 = vld [vmem:[%s1 + $0x8] sm:$0xf]
      %v254 = vld [vmem:[%s1 + $0xc] sm:$0xf]
      %v255 = vld [vmem:[%s245] sm:$0xf]
      %v256 = vld [vmem:[%s2] sm:$0xff]
      %v257 = vld [vmem:[%s2 + $0x8] sm:$0xff]
      %v258 = vld [vmem:[%s2 + $0x10] sm:$0xff]
      %v259 = vld [vmem:[%s2 + $0x18] sm:$0xff]
      %261 = vset.pattern.permute.xlu0 0
      %262 = vperm.xlu0 %261, %v256
      %v263 = vpop.permute.xlu0 %262
      %266 = vset.pattern.permute.xlu0 0
      %267 = vperm.xlu0 %266, %v257
      %v268 = vpop.permute.xlu0 %267
      %271 = vset.pattern.permute.xlu0 0
      %272 = vperm.xlu0 %271, %v258
      %v273 = vpop.permute.xlu0 %272
      %276 = vset.pattern.permute.xlu0 0
      %277 = vperm.xlu0 %276, %v259
      %v278 = vpop.permute.xlu0 %277
      %v284 = vunpack.c.l.b16 %v251
      %v285 = vunpack.c.l.b16 %v252
      %v286 = vunpack.c.l.b16 %v253
      %v287 = vunpack.c.l.b16 %v254
      %v288 = vpack.c.b16 %v285, %v284
      %v289 = vpack.c.b16 %v287, %v286
      %v292 = vunpack.c.l.s4 1983009808
      %v293 = vunpack.c.0.s8 %v292
      %v294 = vlaneseq
      %v295 = vshrl.u32 %v294, 7
      %v296 = vsub.s32 %v293, %v295
      %v297 = vrot.slane %v255, %v296
      %v298 = vcombine.high %v297, %v297
      %vm299 = vcmask 23552
      %v301 = vsel %vm299, %v288, 0
      %v304 = vsel %vm299, %v289, 0
      %vm306 = vcmask 1040384
      %vm307 = vcmask 1041408
      %v308 = vsel %vm306, 4294967295, 65535
      %v309 = vsel %vm307, %v308, 0
      %v311 = vand.u32 %v297, %v309
      %v314 = vand.u32 %v298, %v309
      %316 = vmatprep.subr.bf16.mxu0 %v314
      %317 = vmatpush1.bf16.msra.mxu0 %v311
      %318 = vmatprep.subr.bf16.mxu0 0
      %319 = vmatpush1.bf16.msra.mxu0 0
      %320 = vmatprep.subr.bf16.mxu0 0
      %321 = vmatpush1.bf16.msra.mxu0 0
      %322 = vmatprep.subr.bf16.mxu0 0
      %323 = vmatpush1.bf16.msra.mxu0 0
      %324 = vmatprep.subr.bf16.mxu0 0
      %325 = vmatpush1.bf16.msra.mxu0 0
      %326 = vmatprep.subr.bf16.mxu0 0
      %327 = vmatpush1.bf16.msra.mxu0 0
      %328 = vmatprep.subr.bf16.mxu0 0
      %329 = vmatpush1.bf16.msra.mxu0 0
      %330 = vmatprep.subr.bf16.mxu0 0
      %331 = vmatpush1.bf16.msra.mxu0 0
      %332 = vmatprep.subr.bf16.mxu0 0
      %333 = vmatpush1.bf16.msra.mxu0 0
      %334 = vmatprep.subr.bf16.mxu0 0
      %335 = vmatpush1.bf16.msra.mxu0 0
      %336 = vmatprep.subr.bf16.mxu0 0
      %337 = vmatpush1.bf16.msra.mxu0 0
      %338 = vmatprep.subr.bf16.mxu0 0
      %339 = vmatpush1.bf16.msra.mxu0 0
      %340 = vmatprep.subr.bf16.mxu0 0
      %341 = vmatpush1.bf16.msra.mxu0 0
      %342 = vmatprep.subr.bf16.mxu0 0
      %343 = vmatpush1.bf16.msra.mxu0 0
      %344 = vmatprep.subr.bf16.mxu0 0
      %345 = vmatpush1.bf16.msra.mxu0 0
      %346 = vmatprep.subr.bf16.mxu0 0
      %347 = vmatpush1.bf16.msra.mxu0 0
      %348 = vmatprep.mubr.bf16.mxu0 0
      %349 = vmatmul.mubr.bf16.gmra.mrb[0].mxu0 %v301
      %v350 = vpop.f32.mrb[0].mxu0
      %v351 = vadd.f32 %v263, %v350
      %v352 = vpop.f32.mrb[0].mxu0
      %v353 = vadd.f32 %v263, %v352
      %v354 = vpop.f32.mrb[0].mxu0
      %v355 = vadd.f32 %v268, %v354
      %v356 = vpop.f32.mrb[0].mxu0
      %v357 = vadd.f32 %v268, %v356
      %358 = vmatprep.mubr.bf16.mxu0 0
      %359 = vmatmul.mubr.bf16.gmra.mrb[0].mxu0 %v304
      %v360 = vpop.f32.mrb[0].mxu0
      %v361 = vadd.f32 %v273, %v360
      %v362 = vpop.f32.mrb[0].mxu0
      %v363 = vadd.f32 %v273, %v362
      %v364 = vpop.f32.mrb[0].mxu0
      %v365 = vadd.f32 %v278, %v364
      %v366 = vpop.f32.mrb[0].mxu0
      %v367 = vadd.f32 %v278, %v366
      %368 = vdwg.mxu0
      %v369 = vmax.f32 %v351, 0.0
      %v370 = vmax.f32 %v353, 0.0
      %v371 = vmax.f32 %v355, 0.0
      %v372 = vmax.f32 %v357, 0.0
      %v373 = vmax.f32 %v361, 0.0
      %v374 = vmax.f32 %v363, 0.0
      %v375 = vmax.f32 %v365, 0.0
      %v376 = vmax.f32 %v367, 0.0
      %v377 = vadd.f32 %v369, %v370
      %378 = vadd.xlane.f32.xlu0 %v377
      %v379 = vpop.xlane.xlu0 %378
      %v380 = vadd.f32 %v371, %v372
      %381 = vadd.xlane.f32.xlu0 %v380
      %v382 = vpop.xlane.xlu0 %381
      %v383 = vadd.f32 %v373, %v374
      %384 = vadd.xlane.f32.xlu0 %v383
      %v385 = vpop.xlane.xlu0 %384
      %v386 = vadd.f32 %v375, %v376
      %387 = vadd.xlane.f32.xlu0 %v386
      %v388 = vpop.xlane.xlu0 %387
      %v389 = vmul.f32 %v379, 0.00390625
      %v390 = vmul.f32 %v382, 0.00390625
      %v391 = vmul.f32 %v385, 0.00390625
      %v392 = vmul.f32 %v388, 0.00390625
      %v393 = vld [vmem:[%s3] sm:$0xff]
      %v394 = vld [vmem:[%s4] sm:$0xff]
      %v395 = vld [vmem:[%s4 + $0x8] sm:$0xff]
      %v396 = vld [vmem:[%s4 + $0x10] sm:$0xff]
      %v397 = vld [vmem:[%s4 + $0x18] sm:$0xff]
      %v398 = vmul.f32 %v389, %v394
      %v399 = vmul.f32 %v390, %v395
      %v400 = vmul.f32 %v391, %v396
      %v401 = vmul.f32 %v392, %v397
      %v402 = vadd.f32 %v398, %v399
      %v403 = vadd.f32 %v402, %v400
      %v404 = vadd.f32 %v403, %v401
      %v405 = vrot.slane %v404, 4
      %v406 = vadd.f32 %v404, %v405
      %v407 = vrot.slane %v406, 2
      %v408 = vadd.f32 %v406, %v407
      %v409 = vrot.slane %v408, 1
      %v410 = vadd.f32 %v408, %v409
      %vm411 = vcmask 261120
      %v413 = vsel %vm411, %v393, 0
      %415 = vmatprep.subr.mxu0 0.0
      %v416 = vand.u32 %v394, 4294901760
      %417 = vmatpush1.msra.mxu0 %v416
      %418 = vmatprep.subr.mxu0 0.0
      %v419 = vand.u32 %v395, 4294901760
      %420 = vmatpush1.msra.mxu0 %v419
      %421 = vmatprep.subr.mxu0 0.0
      %v422 = vand.u32 %v396, 4294901760
      %423 = vmatpush1.msra.mxu0 %v422
      %424 = vmatprep.subr.mxu0 0.0
      %v425 = vand.u32 %v397, 4294901760
      %426 = vmatpush1.msra.mxu0 %v425
      %427 = vmatprep.subr.mxu0 0.0
      %428 = vmatpush1.msra.mxu0 0.0
      %429 = vmatprep.subr.mxu0 0.0
      %430 = vmatpush1.msra.mxu0 0.0
      %431 = vmatprep.subr.mxu0 0.0
      %432 = vmatpush1.msra.mxu0 0.0
      %433 = vmatprep.subr.mxu0 0.0
      %434 = vmatpush1.msra.mxu0 0.0
      %435 = vmatprep.subr.mxu0 0.0
      %436 = vmatpush1.msra.mxu0 0.0
      %437 = vmatprep.subr.mxu0 0.0
      %438 = vmatpush1.msra.mxu0 0.0
      %439 = vmatprep.subr.mxu0 0.0
      %440 = vmatpush1.msra.mxu0 0.0
      %441 = vmatprep.subr.mxu0 0.0
      %442 = vmatpush1.msra.mxu0 0.0
      %443 = vmatprep.subr.mxu0 0.0
      %444 = vmatpush1.msra.mxu0 0.0
      %445 = vmatprep.subr.mxu0 0.0
      %446 = vmatpush1.msra.mxu0 0.0
      %447 = vmatprep.subr.mxu0 0.0
      %448 = vmatpush1.msra.mxu0 0.0
      %449 = vmatprep.subr.mxu0 0.0
      %450 = vmatpush1.msra.mxu0 0.0
      %451 = vmatprep.subr.mxu0 0.0
      %452 = vmatpush1.msra.mxu0 0.0
      %453 = vmatprep.subr.mxu0 0.0
      %454 = vmatpush1.msra.mxu0 0.0
      %455 = vmatprep.subr.mxu0 0.0
      %456 = vmatpush1.msra.mxu0 0.0
      %457 = vmatprep.subr.mxu0 0.0
      %458 = vmatpush1.msra.mxu0 0.0
      %459 = vmatprep.subr.mxu0 0.0
      %460 = vmatpush1.msra.mxu0 0.0
      %461 = vmatprep.subr.mxu0 0.0
      %462 = vmatpush1.msra.mxu0 0.0
      %463 = vmatprep.subr.mxu0 0.0
      %464 = vmatpush1.msra.mxu0 0.0
      %465 = vmatprep.subr.mxu0 0.0
      %466 = vmatpush1.msra.mxu0 0.0
      %467 = vmatprep.subr.mxu0 0.0
      %468 = vmatpush1.msra.mxu0 0.0
      %469 = vmatprep.subr.mxu0 0.0
      %470 = vmatpush1.msra.mxu0 0.0
      %471 = vmatprep.subr.mxu0 0.0
      %472 = vmatpush1.msra.mxu0 0.0
      %473 = vmatprep.subr.mxu0 0.0
      %474 = vmatpush1.msra.mxu0 0.0
      %475 = vmatprep.subr.mxu0 0.0
      %476 = vmatpush1.msra.mxu0 0.0
      %477 = vmatprep.subr.mxu0 0.0
      %478 = vmatpush1.msra.mxu0 0.0
      %479 = vmatprep.subr.mxu0 0.0
      %480 = vmatpush1.msra.mxu0 0.0
      %481 = vmatprep.subr.mxu0 0.0
      %482 = vmatpush1.msra.mxu0 0.0
      %483 = vmatprep.mubr.f32.mxu0 0.0
      %v484 = vand.u32 %v413, 4294901760
      %v485 = vsub.f32 %v413, %v484
      %v486 = vand.u32 %v485, 4294901760
      %v487 = vsub.f32 %v485, %v486
      %v488 = vand.u32 %v487, 4294901760
      %489 = vmatmul.mubr.f32.gmra.mrb[0].mxu0 %v488
      %v490 = vpop.f32.mrb[0].mxu0
      %v491 = vadd.f32 %v410, %v490
      %v492 = vpop.f32.mrb[0].mxu0
      %493 = vdwg.mxu0
      %494 = vmatprep.subr.mxu0 0.0
      %v495 = vand.u32 %v394, 4294901760
      %v496 = vsub.f32 %v394, %v495
      %v497 = vand.u32 %v496, 4294901760
      %v498 = vsub.f32 %v496, %v497
      %v499 = vand.u32 %v498, 4294901760
      %500 = vmatpush1.msra.mxu0 %v499
      %501 = vmatprep.subr.mxu0 0.0
      %v502 = vand.u32 %v395, 4294901760
      %v503 = vsub.f32 %v395, %v502
      %v504 = vand.u32 %v503, 4294901760
      %v505 = vsub.f32 %v503, %v504
      %v506 = vand.u32 %v505, 4294901760
      %507 = vmatpush1.msra.mxu0 %v506
      %508 = vmatprep.subr.mxu0 0.0
      %v509 = vand.u32 %v396, 4294901760
      %v510 = vsub.f32 %v396, %v509
      %v511 = vand.u32 %v510, 4294901760
      %v512 = vsub.f32 %v510, %v511
      %v513 = vand.u32 %v512, 4294901760
      %514 = vmatpush1.msra.mxu0 %v513
      %515 = vmatprep.subr.mxu0 0.0
      %v516 = vand.u32 %v397, 4294901760
      %v517 = vsub.f32 %v397, %v516
      %v518 = vand.u32 %v517, 4294901760
      %v519 = vsub.f32 %v517, %v518
      %v520 = vand.u32 %v519, 4294901760
      %521 = vmatpush1.msra.mxu0 %v520
      %522 = vmatprep.subr.mxu0 0.0
      %523 = vmatpush1.msra.mxu0 0.0
      %524 = vmatprep.subr.mxu0 0.0
      %525 = vmatpush1.msra.mxu0 0.0
      %526 = vmatprep.subr.mxu0 0.0
      %527 = vmatpush1.msra.mxu0 0.0
      %528 = vmatprep.subr.mxu0 0.0
      %529 = vmatpush1.msra.mxu0 0.0
      %530 = vmatprep.subr.mxu0 0.0
      %531 = vmatpush1.msra.mxu0 0.0
      %532 = vmatprep.subr.mxu0 0.0
      %533 = vmatpush1.msra.mxu0 0.0
      %534 = vmatprep.subr.mxu0 0.0
      %535 = vmatpush1.msra.mxu0 0.0
      %536 = vmatprep.subr.mxu0 0.0
      %537 = vmatpush1.msra.mxu0 0.0
      %538 = vmatprep.subr.mxu0 0.0
      %539 = vmatpush1.msra.mxu0 0.0
      %540 = vmatprep.subr.mxu0 0.0
      %541 = vmatpush1.msra.mxu0 0.0
      %542 = vmatprep.subr.mxu0 0.0
      %543 = vmatpush1.msra.mxu0 0.0
      %544 = vmatprep.subr.mxu0 0.0
      %545 = vmatpush1.msra.mxu0 0.0
      %546 = vmatprep.subr.mxu0 0.0
      %547 = vmatpush1.msra.mxu0 0.0
      %548 = vmatprep.subr.mxu0 0.0
      %549 = vmatpush1.msra.mxu0 0.0
      %550 = vmatprep.subr.mxu0 0.0
      %551 = vmatpush1.msra.mxu0 0.0
      %552 = vmatprep.subr.mxu0 0.0
      %553 = vmatpush1.msra.mxu0 0.0
      %554 = vmatprep.subr.mxu0 0.0
      %555 = vmatpush1.msra.mxu0 0.0
      %556 = vmatprep.subr.mxu0 0.0
      %557 = vmatpush1.msra.mxu0 0.0
      %558 = vmatprep.subr.mxu0 0.0
      %559 = vmatpush1.msra.mxu0 0.0
      %560 = vmatprep.subr.mxu0 0.0
      %561 = vmatpush1.msra.mxu0 0.0
      %562 = vmatprep.subr.mxu0 0.0
      %563 = vmatpush1.msra.mxu0 0.0
      %564 = vmatprep.subr.mxu0 0.0
      %565 = vmatpush1.msra.mxu0 0.0
      %566 = vmatprep.subr.mxu0 0.0
      %567 = vmatpush1.msra.mxu0 0.0
      %568 = vmatprep.subr.mxu0 0.0
      %569 = vmatpush1.msra.mxu0 0.0
      %570 = vmatprep.subr.mxu0 0.0
      %571 = vmatpush1.msra.mxu0 0.0
      %572 = vmatprep.subr.mxu0 0.0
      %573 = vmatpush1.msra.mxu0 0.0
      %574 = vmatprep.subr.mxu0 0.0
      %575 = vmatpush1.msra.mxu0 0.0
      %576 = vmatprep.subr.mxu0 0.0
      %577 = vmatpush1.msra.mxu0 0.0
      %578 = vmatprep.mubr.f32.mxu0 0.0
      %v579 = vand.u32 %v413, 4294901760
      %580 = vmatmul.mubr.f32.gmra.mrb[0].mxu0 %v579
      %v581 = vpop.f32.mrb[0].mxu0
      %v582 = vadd.f32 %v491, %v581
      %v583 = vpop.f32.mrb[0].mxu0
      %584 = vdwg.mxu0
      %585 = vmatprep.subr.mxu0 0.0
      %v586 = vand.u32 %v394, 4294901760
      %v587 = vsub.f32 %v394, %v586
      %588 = vmatpush1.msra.mxu0 %v587
      %589 = vmatprep.subr.mxu0 0.0
      %v590 = vand.u32 %v395, 4294901760
      %v591 = vsub.f32 %v395, %v590
      %592 = vmatpush1.msra.mxu0 %v591
      %593 = vmatprep.subr.mxu0 0.0
      %v594 = vand.u32 %v396, 4294901760
      %v595 = vsub.f32 %v396, %v594
      %596 = vmatpush1.msra.mxu0 %v595
      %597 = vmatprep.subr.mxu0 0.0
      %v598 = vand.u32 %v397, 4294901760
      %v599 = vsub.f32 %v397, %v598
      %600 = vmatpush1.msra.mxu0 %v599
      %601 = vmatprep.subr.mxu0 0.0
      %602 = vmatpush1.msra.mxu0 0.0
      %603 = vmatprep.subr.mxu0 0.0
      %604 = vmatpush1.msra.mxu0 0.0
      %605 = vmatprep.subr.mxu0 0.0
      %606 = vmatpush1.msra.mxu0 0.0
      %607 = vmatprep.subr.mxu0 0.0
      %608 = vmatpush1.msra.mxu0 0.0
      %609 = vmatprep.subr.mxu0 0.0
      %610 = vmatpush1.msra.mxu0 0.0
      %611 = vmatprep.subr.mxu0 0.0
      %612 = vmatpush1.msra.mxu0 0.0
      %613 = vmatprep.subr.mxu0 0.0
      %614 = vmatpush1.msra.mxu0 0.0
      %615 = vmatprep.subr.mxu0 0.0
      %616 = vmatpush1.msra.mxu0 0.0
      %617 = vmatprep.subr.mxu0 0.0
      %618 = vmatpush1.msra.mxu0 0.0
      %619 = vmatprep.subr.mxu0 0.0
      %620 = vmatpush1.msra.mxu0 0.0
      %621 = vmatprep.subr.mxu0 0.0
      %622 = vmatpush1.msra.mxu0 0.0
      %623 = vmatprep.subr.mxu0 0.0
      %624 = vmatpush1.msra.mxu0 0.0
      %625 = vmatprep.subr.mxu0 0.0
      %626 = vmatpush1.msra.mxu0 0.0
      %627 = vmatprep.subr.mxu0 0.0
      %628 = vmatpush1.msra.mxu0 0.0
      %629 = vmatprep.subr.mxu0 0.0
      %630 = vmatpush1.msra.mxu0 0.0
      %631 = vmatprep.subr.mxu0 0.0
      %632 = vmatpush1.msra.mxu0 0.0
      %633 = vmatprep.subr.mxu0 0.0
      %634 = vmatpush1.msra.mxu0 0.0
      %635 = vmatprep.subr.mxu0 0.0
      %636 = vmatpush1.msra.mxu0 0.0
      %637 = vmatprep.subr.mxu0 0.0
      %638 = vmatpush1.msra.mxu0 0.0
      %639 = vmatprep.subr.mxu0 0.0
      %640 = vmatpush1.msra.mxu0 0.0
      %641 = vmatprep.subr.mxu0 0.0
      %642 = vmatpush1.msra.mxu0 0.0
      %643 = vmatprep.subr.mxu0 0.0
      %644 = vmatpush1.msra.mxu0 0.0
      %645 = vmatprep.subr.mxu0 0.0
      %646 = vmatpush1.msra.mxu0 0.0
      %647 = vmatprep.subr.mxu0 0.0
      %648 = vmatpush1.msra.mxu0 0.0
      %649 = vmatprep.subr.mxu0 0.0
      %650 = vmatpush1.msra.mxu0 0.0
      %651 = vmatprep.subr.mxu0 0.0
      %652 = vmatpush1.msra.mxu0 0.0
      %653 = vmatprep.subr.mxu0 0.0
      %654 = vmatpush1.msra.mxu0 0.0
      %655 = vmatprep.subr.mxu0 0.0
      %656 = vmatpush1.msra.mxu0 0.0
      %657 = vmatprep.mubr.f32.mxu0 0.0
      %v658 = vand.u32 %v413, 4294901760
      %v659 = vsub.f32 %v413, %v658
      %660 = vmatmul.mubr.f32.gmra.mrb[0].mxu0 %v659
      %v661 = vpop.f32.mrb[0].mxu0
      %v662 = vadd.f32 %v582, %v661
      %v663 = vpop.f32.mrb[0].mxu0
      %664 = vdwg.mxu0
      %665 = vmatprep.subr.mxu0 0.0
      %v666 = vand.u32 %v394, 4294901760
      %667 = vmatpush1.msra.mxu0 %v666
      %668 = vmatprep.subr.mxu0 0.0
      %v669 = vand.u32 %v395, 4294901760
      %670 = vmatpush1.msra.mxu0 %v669
      %671 = vmatprep.subr.mxu0 0.0
      %v672 = vand.u32 %v396, 4294901760
      %673 = vmatpush1.msra.mxu0 %v672
      %674 = vmatprep.subr.mxu0 0.0
      %v675 = vand.u32 %v397, 4294901760
      %676 = vmatpush1.msra.mxu0 %v675
      %677 = vmatprep.subr.mxu0 0.0
      %678 = vmatpush1.msra.mxu0 0.0
      %679 = vmatprep.subr.mxu0 0.0
      %680 = vmatpush1.msra.mxu0 0.0
      %681 = vmatprep.subr.mxu0 0.0
      %682 = vmatpush1.msra.mxu0 0.0
      %683 = vmatprep.subr.mxu0 0.0
      %684 = vmatpush1.msra.mxu0 0.0
      %685 = vmatprep.subr.mxu0 0.0
      %686 = vmatpush1.msra.mxu0 0.0
      %687 = vmatprep.subr.mxu0 0.0
      %688 = vmatpush1.msra.mxu0 0.0
      %689 = vmatprep.subr.mxu0 0.0
      %690 = vmatpush1.msra.mxu0 0.0
      %691 = vmatprep.subr.mxu0 0.0
      %692 = vmatpush1.msra.mxu0 0.0
      %693 = vmatprep.subr.mxu0 0.0
      %694 = vmatpush1.msra.mxu0 0.0
      %695 = vmatprep.subr.mxu0 0.0
      %696 = vmatpush1.msra.mxu0 0.0
      %697 = vmatprep.subr.mxu0 0.0
      %698 = vmatpush1.msra.mxu0 0.0
      %699 = vmatprep.subr.mxu0 0.0
      %700 = vmatpush1.msra.mxu0 0.0
      %701 = vmatprep.subr.mxu0 0.0
      %702 = vmatpush1.msra.mxu0 0.0
      %703 = vmatprep.subr.mxu0 0.0
      %704 = vmatpush1.msra.mxu0 0.0
      %705 = vmatprep.subr.mxu0 0.0
      %706 = vmatpush1.msra.mxu0 0.0
      %707 = vmatprep.subr.mxu0 0.0
      %708 = vmatpush1.msra.mxu0 0.0
      %709 = vmatprep.subr.mxu0 0.0
      %710 = vmatpush1.msra.mxu0 0.0
      %711 = vmatprep.subr.mxu0 0.0
      %712 = vmatpush1.msra.mxu0 0.0
      %713 = vmatprep.subr.mxu0 0.0
      %714 = vmatpush1.msra.mxu0 0.0
      %715 = vmatprep.subr.mxu0 0.0
      %716 = vmatpush1.msra.mxu0 0.0
      %717 = vmatprep.subr.mxu0 0.0
      %718 = vmatpush1.msra.mxu0 0.0
      %719 = vmatprep.subr.mxu0 0.0
      %720 = vmatpush1.msra.mxu0 0.0
      %721 = vmatprep.subr.mxu0 0.0
      %722 = vmatpush1.msra.mxu0 0.0
      %723 = vmatprep.subr.mxu0 0.0
      %724 = vmatpush1.msra.mxu0 0.0
      %725 = vmatprep.subr.mxu0 0.0
      %726 = vmatpush1.msra.mxu0 0.0
      %727 = vmatprep.subr.mxu0 0.0
      %728 = vmatpush1.msra.mxu0 0.0
      %729 = vmatprep.subr.mxu0 0.0
      %730 = vmatpush1.msra.mxu0 0.0
      %731 = vmatprep.subr.mxu0 0.0
      %732 = vmatpush1.msra.mxu0 0.0
      %733 = vmatprep.mubr.f32.mxu0 0.0
      %v734 = vand.u32 %v413, 4294901760
      %v735 = vsub.f32 %v413, %v734
      %v736 = vand.u32 %v735, 4294901760
      %737 = vmatmul.mubr.f32.gmra.mrb[0].mxu0 %v736
      %v738 = vpop.f32.mrb[0].mxu0
      %v739 = vadd.f32 %v662, %v738
      %v740 = vpop.f32.mrb[0].mxu0
      %741 = vdwg.mxu0
      %742 = vmatprep.subr.mxu0 0.0
      %v743 = vand.u32 %v394, 4294901760
      %v744 = vsub.f32 %v394, %v743
      %v745 = vand.u32 %v744, 4294901760
      %746 = vmatpush1.msra.mxu0 %v745
      %747 = vmatprep.subr.mxu0 0.0
      %v748 = vand.u32 %v395, 4294901760
      %v749 = vsub.f32 %v395, %v748
      %v750 = vand.u32 %v749, 4294901760
      %751 = vmatpush1.msra.mxu0 %v750
      %752 = vmatprep.subr.mxu0 0.0
      %v753 = vand.u32 %v396, 4294901760
      %v754 = vsub.f32 %v396, %v753
      %v755 = vand.u32 %v754, 4294901760
      %756 = vmatpush1.msra.mxu0 %v755
      %757 = vmatprep.subr.mxu0 0.0
      %v758 = vand.u32 %v397, 4294901760
      %v759 = vsub.f32 %v397, %v758
      %v760 = vand.u32 %v759, 4294901760
      %761 = vmatpush1.msra.mxu0 %v760
      %762 = vmatprep.subr.mxu0 0.0
      %763 = vmatpush1.msra.mxu0 0.0
      %764 = vmatprep.subr.mxu0 0.0
      %765 = vmatpush1.msra.mxu0 0.0
      %766 = vmatprep.subr.mxu0 0.0
      %767 = vmatpush1.msra.mxu0 0.0
      %768 = vmatprep.subr.mxu0 0.0
      %769 = vmatpush1.msra.mxu0 0.0
      %770 = vmatprep.subr.mxu0 0.0
      %771 = vmatpush1.msra.mxu0 0.0
      %772 = vmatprep.subr.mxu0 0.0
      %773 = vmatpush1.msra.mxu0 0.0
      %774 = vmatprep.subr.mxu0 0.0
      %775 = vmatpush1.msra.mxu0 0.0
      %776 = vmatprep.subr.mxu0 0.0
      %777 = vmatpush1.msra.mxu0 0.0
      %778 = vmatprep.subr.mxu0 0.0
      %779 = vmatpush1.msra.mxu0 0.0
      %780 = vmatprep.subr.mxu0 0.0
      %781 = vmatpush1.msra.mxu0 0.0
      %782 = vmatprep.subr.mxu0 0.0
      %783 = vmatpush1.msra.mxu0 0.0
      %784 = vmatprep.subr.mxu0 0.0
      %785 = vmatpush1.msra.mxu0 0.0
      %786 = vmatprep.subr.mxu0 0.0
      %787 = vmatpush1.msra.mxu0 0.0
      %788 = vmatprep.subr.mxu0 0.0
      %789 = vmatpush1.msra.mxu0 0.0
      %790 = vmatprep.subr.mxu0 0.0
      %791 = vmatpush1.msra.mxu0 0.0
      %792 = vmatprep.subr.mxu0 0.0
      %793 = vmatpush1.msra.mxu0 0.0
      %794 = vmatprep.subr.mxu0 0.0
      %795 = vmatpush1.msra.mxu0 0.0
      %796 = vmatprep.subr.mxu0 0.0
      %797 = vmatpush1.msra.mxu0 0.0
      %798 = vmatprep.subr.mxu0 0.0
      %799 = vmatpush1.msra.mxu0 0.0
      %800 = vmatprep.subr.mxu0 0.0
      %801 = vmatpush1.msra.mxu0 0.0
      %802 = vmatprep.subr.mxu0 0.0
      %803 = vmatpush1.msra.mxu0 0.0
      %804 = vmatprep.subr.mxu0 0.0
      %805 = vmatpush1.msra.mxu0 0.0
      %806 = vmatprep.subr.mxu0 0.0
      %807 = vmatpush1.msra.mxu0 0.0
      %808 = vmatprep.subr.mxu0 0.0
      %809 = vmatpush1.msra.mxu0 0.0
      %810 = vmatprep.subr.mxu0 0.0
      %811 = vmatpush1.msra.mxu0 0.0
      %812 = vmatprep.subr.mxu0 0.0
      %813 = vmatpush1.msra.mxu0 0.0
      %814 = vmatprep.subr.mxu0 0.0
      %815 = vmatpush1.msra.mxu0 0.0
      %816 = vmatprep.subr.mxu0 0.0
      %817 = vmatpush1.msra.mxu0 0.0
      %818 = vmatprep.mubr.f32.mxu0 0.0
      %v819 = vand.u32 %v413, 4294901760
      %820 = vmatmul.mubr.f32.gmra.mrb[0].mxu0 %v819
      %v821 = vpop.f32.mrb[0].mxu0
      %v822 = vadd.f32 %v739, %v821
      %v823 = vpop.f32.mrb[0].mxu0
      %824 = vdwg.mxu0
      %825 = vmatprep.subr.mxu0 0.0
      %v826 = vand.u32 %v394, 4294901760
      %827 = vmatpush1.msra.mxu0 %v826
      %828 = vmatprep.subr.mxu0 0.0
      %v829 = vand.u32 %v395, 4294901760
      %830 = vmatpush1.msra.mxu0 %v829
      %831 = vmatprep.subr.mxu0 0.0
      %v832 = vand.u32 %v396, 4294901760
      %833 = vmatpush1.msra.mxu0 %v832
      %834 = vmatprep.subr.mxu0 0.0
      %v835 = vand.u32 %v397, 4294901760
      %836 = vmatpush1.msra.mxu0 %v835
      %837 = vmatprep.subr.mxu0 0.0
      %838 = vmatpush1.msra.mxu0 0.0
      %839 = vmatprep.subr.mxu0 0.0
      %840 = vmatpush1.msra.mxu0 0.0
      %841 = vmatprep.subr.mxu0 0.0
      %842 = vmatpush1.msra.mxu0 0.0
      %843 = vmatprep.subr.mxu0 0.0
      %844 = vmatpush1.msra.mxu0 0.0
      %845 = vmatprep.subr.mxu0 0.0
      %846 = vmatpush1.msra.mxu0 0.0
      %847 = vmatprep.subr.mxu0 0.0
      %848 = vmatpush1.msra.mxu0 0.0
      %849 = vmatprep.subr.mxu0 0.0
      %850 = vmatpush1.msra.mxu0 0.0
      %851 = vmatprep.subr.mxu0 0.0
      %852 = vmatpush1.msra.mxu0 0.0
      %853 = vmatprep.subr.mxu0 0.0
      %854 = vmatpush1.msra.mxu0 0.0
      %855 = vmatprep.subr.mxu0 0.0
      %856 = vmatpush1.msra.mxu0 0.0
      %857 = vmatprep.subr.mxu0 0.0
      %858 = vmatpush1.msra.mxu0 0.0
      %859 = vmatprep.subr.mxu0 0.0
      %860 = vmatpush1.msra.mxu0 0.0
      %861 = vmatprep.subr.mxu0 0.0
      %862 = vmatpush1.msra.mxu0 0.0
      %863 = vmatprep.subr.mxu0 0.0
      %864 = vmatpush1.msra.mxu0 0.0
      %865 = vmatprep.subr.mxu0 0.0
      %866 = vmatpush1.msra.mxu0 0.0
      %867 = vmatprep.subr.mxu0 0.0
      %868 = vmatpush1.msra.mxu0 0.0
      %869 = vmatprep.subr.mxu0 0.0
      %870 = vmatpush1.msra.mxu0 0.0
      %871 = vmatprep.subr.mxu0 0.0
      %872 = vmatpush1.msra.mxu0 0.0
      %873 = vmatprep.subr.mxu0 0.0
      %874 = vmatpush1.msra.mxu0 0.0
      %875 = vmatprep.subr.mxu0 0.0
      %876 = vmatpush1.msra.mxu0 0.0
      %877 = vmatprep.subr.mxu0 0.0
      %878 = vmatpush1.msra.mxu0 0.0
      %879 = vmatprep.subr.mxu0 0.0
      %880 = vmatpush1.msra.mxu0 0.0
      %881 = vmatprep.subr.mxu0 0.0
      %882 = vmatpush1.msra.mxu0 0.0
      %883 = vmatprep.subr.mxu0 0.0
      %884 = vmatpush1.msra.mxu0 0.0
      %885 = vmatprep.subr.mxu0 0.0
      %886 = vmatpush1.msra.mxu0 0.0
      %887 = vmatprep.subr.mxu0 0.0
      %888 = vmatpush1.msra.mxu0 0.0
      %889 = vmatprep.subr.mxu0 0.0
      %890 = vmatpush1.msra.mxu0 0.0
      %891 = vmatprep.subr.mxu0 0.0
      %892 = vmatpush1.msra.mxu0 0.0
      %893 = vmatprep.mubr.f32.mxu0 0.0
      %v894 = vand.u32 %v413, 4294901760
      %895 = vmatmul.mubr.f32.gmra.mrb[0].mxu0 %v894
      %v896 = vpop.f32.mrb[0].mxu0
      %v897 = vadd.f32 %v822, %v896
      %v898 = vpop.f32.mrb[0].mxu0
      %899 = vdwg.mxu0
      %v900 = vld [vmem:[%s5] sm:$0x1]
      %v902 = vlaneseq
      %v903 = vshrl.u32 %v902, 7
      %v904 = vsub.s32 0, %v903
      %v905 = vrot.slane %v900, %v904
      %v907 = vadd.f32 %v897, %v905
      %908 = vst [vmem:[%s249] sm:$0xff] %v907
      %p909 = scmp.lt.s32.totalorder %s17, 1
      %s910 = scalar_select %p909, %s17, 1
      %s911 = smul.addr %s910, 8
      %s912 = scalar_lea.vmem %s6, %s911
      // Predicated region
      $region45: #{simple_baseline_forward_inference.1} parent=43 // pred_check
        %p913 = pneg %p166
      $region46: #{simple_baseline_forward_inference.1} parent=43 // pred_check_branch
        %915 = sbr.rel (%p913) target = $region48
      $region47: #{simple_baseline_forward_inference.1} parent=43 // pred_region
        _
      $region48: #{simple_baseline_forward_inference.1} parent=43 // pred_fallthru
        _
    $region44: #{simple_baseline_forward_inference.1} parent=5 // pred_fallthru
      _
    %p916 = scmp.le.s32.totalorder 2, %s12
    // Predicated region
    $region49: #{simple_baseline_forward_inference.1} parent=5 // pred_check
      %p917 = pneg %p916
    $region50: #{simple_baseline_forward_inference.1} parent=5 // pred_check_branch
      %919 = sbr.rel (%p917) target = $region52
    $region51: #{simple_baseline_forward_inference.1} parent=5 // pred_region
      %s920 = ssub.s32 %s12, 2
      // Predicated region
      $region53: #{simple_baseline_forward_inference.1} parent=51 // pred_check
        %p921 = pneg %p172
      $region54: #{simple_baseline_forward_inference.1} parent=51 // pred_check_branch
        %923 = sbr.rel (%p921) target = $region56
      $region55: #{simple_baseline_forward_inference.1} parent=51 // pred_region
        %p924 = scmp.lt.s32.totalorder %s18, 1
        %s925 = scalar_select %p924, %s18, 1
        %s926 = smul.addr %s925, 8
        %s927 = scalar_lea.vmem %s6, %s926
      $region56: #{simple_baseline_forward_inference.1} parent=51 // pred_fallthru
        _
    $region52: #{simple_baseline_forward_inference.1} parent=5 // pred_fallthru
      _
  $region6: #{simple_baseline_forward_inference.1} parent=0 // loop_footer
    %s16 = sadd.s32 1, %s12
  $region7: #{simple_baseline_forward_inference.1} parent=0 // loop_footer_branch
    %11 = sbr.rel target = $region3
  $region8: #{simple_baseline_forward_inference.1} parent=0 // loop_exit
    _

</llo_original>
